<compile_context>
chip_gen: v7x
topology: tpu7x:2x2x1
jax: 0.10.0
libtpu: 0.0.40
codegen_flags: <defaults>
</compile_context>

<pallas_src>
import numpy as np

import jax
import jax.numpy as jnp
from jax.experimental import pallas as pl
from jax.experimental.pallas import tpu as pltpu


# ----------------------------------------------------------------------------
# Pallas kernel: fused  O = relu(A @ W + bias)   (BN scale pre-folded into W)
# ----------------------------------------------------------------------------
def _matmul_bias_relu_kernel(a_ref, w_ref, b_ref, o_ref):
    acc = jnp.dot(a_ref[...], w_ref[...], preferred_element_type=jnp.float32)
    y = jnp.maximum(acc + b_ref[...], 0.0)      # folded BN bias + ReLU (f32)
    o_ref[...] = y.astype(o_ref.dtype)          # store bf16


def _pad_axis(x, axis, mult):
    pad = (-x.shape[axis]) % mult
    if pad == 0:
        return x
    widths = [(0, 0)] * x.ndim
    widths[axis] = (0, pad)
    return jnp.pad(x, widths)


def _choose_tm(m_rows):
    # Prefer fat row tiles (fewer ~0.35us grid steps, closer to HBM roofline)
    # but keep >=2 grid steps so v7x's two TensorCores both get work and the
    # zero-padding waste stays < 50%.
    for tm in (1024, 512, 256, 128):
        if m_rows >= 2 * tm:
            return tm
    return 128


def matmul_bias_relu(a, w, bias, out_dtype=jnp.bfloat16):
    """a: (M, K) bf16 active-row patches, w: (K, C) bf16 (BN scale folded in),
    bias: (C,) f32.  Returns relu(a @ w + bias) as (M, C) in out_dtype
    (f32 MXU accumulation)."""
    M, K = a.shape
    C = w.shape[1]
    TM = _choose_tm(M)

    a = _pad_axis(_pad_axis(a, 0, TM), 1, 128)
    wp = _pad_axis(_pad_axis(w, 0, 128), 1, 128)
    b = _pad_axis(bias.reshape(1, C).astype(jnp.float32), 1, 128)

    Mp, Kp = a.shape
    Cp = wp.shape[1]

    out = pl.pallas_call(
        _matmul_bias_relu_kernel,
        out_shape=jax.ShapeDtypeStruct((Mp, Cp), out_dtype),
        grid_spec=pltpu.PrefetchScalarGridSpec(
            num_scalar_prefetch=0,
            grid=(Mp // TM,),
            in_specs=[
                pl.BlockSpec((TM, Kp), lambda i: (i, 0)),   # active-row patches
                pl.BlockSpec((Kp, Cp), lambda i: (0, 0)),   # folded weights (resident)
                pl.BlockSpec((1, Cp), lambda i: (0, 0)),    # folded BN bias
            ],
            out_specs=pl.BlockSpec((TM, Cp), lambda i: (i, 0)),
        ),
        compiler_params=pltpu.CompilerParams(
            dimension_semantics=("parallel",),
            # Worst case ~8 MiB double-buffered bf16; a 32 MiB scoped limit is
            # safe on v5e (128 MiB phys), v6e (128 MiB) and v7x (64 MiB).
            vmem_limit_bytes=32 * 1024 * 1024,
        ),
    )(a, wp, b)
    return out[:M, :C]


# ----------------------------------------------------------------------------
# Host-side "rulebook": active masks / indices (depend only on coordinates)
# ----------------------------------------------------------------------------
def downsample_mask(mask, ksize, stride, padding):
    """Active output sites of a strided SparseConv3d: any active input voxel
    in the receptive field (zero padding counts as inactive)."""
    N, D, H, W = mask.shape
    kd, kh, kw = ksize
    sd, sh, sw = stride
    pd, ph, pw = padding
    mp = np.pad(mask, ((0, 0), (pd, pd), (ph, ph), (pw, pw)))
    Do = (D + 2 * pd - kd) // sd + 1
    Ho = (H + 2 * ph - kh) // sh + 1
    Wo = (W + 2 * pw - kw) // sw + 1
    out = np.zeros((N, Do, Ho, Wo), bool)
    for i in range(kd):
        for j in range(kh):
            for k in range(kw):
                out |= mp[:, i:i + (Do - 1) * sd + 1:sd,
                             j:j + (Ho - 1) * sh + 1:sh,
                             k:k + (Wo - 1) * sw + 1:sw]
    return out


def active_indices(mask):
    n, d, h, w = np.nonzero(mask)
    as_i32 = lambda a: jnp.asarray(a, dtype=jnp.int32)
    return (as_i32(n), as_i32(d), as_i32(h), as_i32(w))


# ----------------------------------------------------------------------------
# Device glue: gather active-row patches, run kernel, scatter back
# ----------------------------------------------------------------------------
def gather_active_patches(x, idx, ksize, stride, padding):
    """Gather im2col patches only at active OUTPUT sites.

    x: (N, D, H, W, C) bf16 dense grid; idx: 4 int32 arrays (M_act,) of active
    output coordinates.  Returns (M_act, kd*kh*kw*C) bf16 patches without ever
    materializing the dense im2col tensor in HBM.
    """
    n_idx, d_idx, h_idx, w_idx = idx
    kd, kh, kw = ksize
    sd, sh, sw = stride
    pd, ph, pw = padding
    xp = jnp.pad(x, ((0, 0), (pd, pd), (ph, ph), (pw, pw), (0, 0)))
    bd = d_idx * sd
    bh = h_idx * sh
    bw = w_idx * sw
    cols = []
    for i in range(kd):
        for j in range(kh):
            for k in range(kw):
                cols.append(xp[n_idx, bd + i, bh + j, bw + k, :])
    return jnp.concatenate(cols, axis=-1)


def apply_conv_block(x, idx, out_spatial, params, cfg):
    """One (SubM/Sparse)Conv3d + BN + ReLU block, active sites only."""
    N = x.shape[0]
    Do, Ho, Wo = out_spatial
    cout = cfg["cout"]
    y = jnp.zeros((N, Do, Ho, Wo, cout), x.dtype)
    m_act = int(idx[0].shape[0])
    if m_act == 0:
        return y
    patches = gather_active_patches(x, idx, cfg["ksize"], cfg["stride"],
                                    cfg["padding"])
    out_act = matmul_bias_relu(patches, params["w"], params["bias"],
                               out_dtype=x.dtype)
    # inactive output sites stay exactly zero, matching spconv's x.dense()
    return y.at[idx[0], idx[1], idx[2], idx[3], :].set(out_act)


# ----------------------------------------------------------------------------
# SpMiddleFHD: layer configuration + deterministic parameter init + forward
# ----------------------------------------------------------------------------
def make_layer_cfgs(in_channels):
    subm = dict(ksize=(3, 3, 3), stride=(1, 1, 1), padding=(1, 1, 1), subm=True)
    down = dict(ksize=(3, 3, 3), stride=(2, 2, 2), padding=(1, 1, 1), subm=False)
    cfgs = []
    # conv0: double_conv(in, 16)
    cfgs.append(dict(cin=in_channels, cout=16, **subm))
    cfgs.append(dict(cin=16, cout=16, **subm))
    # down0: stride_conv(16, 32)
    cfgs.append(dict(cin=16, cout=32, **down))
    # conv1: double_conv(32, 32)
    cfgs.append(dict(cin=32, cout=32, **subm))
    cfgs.append(dict(cin=32, cout=32, **subm))
    # down1: stride_conv(32, 64)
    cfgs.append(dict(cin=32, cout=64, **down))
    # conv2: triple_conv(64, 64)
    cfgs += [dict(cin=64, cout=64, **subm) for _ in range(3)]
    # down2: stride_conv(64, 64)
    cfgs.append(dict(cin=64, cout=64, **down))
    # conv3: triple_conv(64, 64)
    cfgs += [dict(cin=64, cout=64, **subm) for _ in range(3)]
    # down3: SpConv3d(64, 64, (3,1,1), (2,1,1)) (padding 0) + BN + ReLU
    cfgs.append(dict(cin=64, cout=64, ksize=(3, 1, 1), stride=(2, 1, 1),
                     padding=(0, 0, 0), subm=False))
    return cfgs


def init_params(key, cfgs):
    eps = 1e-3  # BatchNorm1d(eps=0.001)
    params = []
    for cfg in cfgs:
        kd, kh, kw = cfg["ksize"]
        K = kd * kh * kw * cfg["cin"]
        C = cfg["cout"]
        key, kw_, kg, kb, km, kv = jax.random.split(key, 6)
        w = jax.random.normal(kw_, (K, C), jnp.float32) * (2.0 / K) ** 0.5
        gamma = 1.0 + 0.1 * jax.random.normal(kg, (C,), jnp.float32)
        beta = 0.1 * jax.random.normal(kb, (C,), jnp.float32)
        r_mean = 0.1 * jax.random.normal(km, (C,), jnp.float32)
        r_var = 1.0 + 0.1 * jnp.abs(jax.random.normal(kv, (C,), jnp.float32))
        scale = gamma / jnp.sqrt(r_var + eps)
        bias = beta - r_mean * scale
        params.append(dict(w=w, scale=scale, bias=bias))
    return params


def fold_params(params):
    """Fold eval-mode BN scale into the conv weights and cast streams to bf16.
    (Done before zero-padding, so padded columns remain exactly zero.)"""
    return [dict(w=(p["w"] * p["scale"][None, :]).astype(jnp.bfloat16),
                 bias=p["bias"].astype(jnp.float32)) for p in params]


def sp_middle_fhd_forward(voxel_features, coors, batch_size, sparse_shape,
                          params, cfgs):
    """voxel_features: (n_vox, Cin), coors: (n_vox, 4) = (batch, d, h, w)."""
    D, H, W = sparse_shape
    Cin = voxel_features.shape[1]
    coors = jnp.asarray(coors, jnp.int32)
    coors_np = np.asarray(coors)

    # SparseConvTensor -> dense bf16 feature grid + host-side active mask
    x = jnp.zeros((batch_size, D, H, W, Cin), jnp.bfloat16)
    x = x.at[coors[:, 0], coors[:, 1], coors[:, 2], coors[:, 3]].set(
        voxel_features.astype(jnp.bfloat16))
    mask = np.zeros((batch_size, D, H, W), bool)
    mask[coors_np[:, 0], coors_np[:, 1], coors_np[:, 2], coors_np[:, 3]] = True

    idx = active_indices(mask)
    for cfg, p in zip(cfgs, params):
        if not cfg["subm"]:
            # strided SparseConv3d: recompute the active output set
            mask = downsample_mask(mask, cfg["ksize"], cfg["stride"],
                                   cfg["padding"])
            idx = active_indices(mask)
        x = apply_conv_block(x, idx, mask.shape[1:], p, cfg)

    # x.dense(): (N, C, D, H, W)  ->  view(N, C*D, H, W)
    N, Do, Ho, Wo, C = x.shape
    ret = jnp.transpose(x, (0, 4, 1, 2, 3)).reshape(N, C * Do, Ho, Wo)
    return ret.astype(jnp.float32)


# ----------------------------------------------------------------------------
if __name__ == "__main__":
    key = jax.random.PRNGKey(0)

    # Small shapes consistent with the module: sparse_shape (D, H, W),
    # in_channels=4, batch=2.
    sparse_shape = (17, 16, 16)
    in_channels = 4
    batch_size = 2
    num_voxels = 300

    kb, kd_, kh_, kw_, kf, kp = jax.random.split(key, 6)
    b = jax.random.randint(kb, (num_voxels,), 0, batch_size)
    d = jax.random.randint(kd_, (num_voxels,), 0, sparse_shape[0])
    h = jax.random.randint(kh_, (num_voxels,), 0, sparse_shape[1])
    w = jax.random.randint(kw_, (num_voxels,), 0, sparse_shape[2])
    coors = jnp.stack([b, d, h, w], axis=1).astype(jnp.int32)
    voxel_features = jax.random.normal(kf, (num_voxels, in_channels),
                                       jnp.float32)

    cfgs = make_layer_cfgs(in_channels)
    params = fold_params(init_params(kp, cfgs))

    out = sp_middle_fhd_forward(voxel_features, coors, batch_size,
                                sparse_shape, params, cfgs)
    out = jax.block_until_ready(out)

    # Expected: D chain 17 -> 9 -> 5 -> 3 -> 1, H/W 16 -> 8 -> 4 -> 2 -> 2,
    # final dense (N, 64, 1, 2, 2) -> (N, 64, 2, 2)
    assert out.shape == (batch_size, 64 * 1, 2, 2), out.shape
    assert bool(jnp.all(jnp.isfinite(out)))
    print("KERNEL_OK")
</pallas_src>

<mosaic_0001>
module attributes {stable_mosaic.version = 11 : i64} {
  func.func @_matmul_bias_relu_kernel(%arg0: i32, %arg1: memref<128x128xbf16, #tpu.memory_space<vmem>>, %arg2: memref<128x128xbf16, #tpu.memory_space<vmem>>, %arg3: memref<1x128xf32, #tpu.memory_space<vmem>>, %arg4: memref<128x128xbf16, #tpu.memory_space<vmem>>) attributes {dimension_semantics = [#tpu.dimension_semantics<parallel>], iteration_bounds = array<i64: 3>, scalar_prefetch = 0 : i64, scratch_operands = 0 : i64, tpu.core_type = #tpu.core_type<tc>, window_params = [{transform_indices = @transform_0, window_bounds = array<i64: 128, 128>}, {pipeline_mode = #tpu.pipeline_mode<synchronous>, transform_indices = @transform_1, window_bounds = array<i64: 128, 128>}, {pipeline_mode = #tpu.pipeline_mode<synchronous>, transform_indices = @transform_2, window_bounds = array<i64: 1, 128>}, {transform_indices = @transform_3, window_bounds = array<i64: 128, 128>}]} {
    %c0 = arith.constant 0 : index
    %c0_0 = arith.constant 0 : index
    %0 = vector.load %arg1[%c0, %c0_0] : memref<128x128xbf16, #tpu.memory_space<vmem>>, vector<128x128xbf16>
    %c0_1 = arith.constant 0 : index
    %c0_2 = arith.constant 0 : index
    %1 = vector.load %arg2[%c0_1, %c0_2] : memref<128x128xbf16, #tpu.memory_space<vmem>>, vector<128x128xbf16>
    %cst = arith.constant dense<0.000000e+00> : vector<128x128xf32>
    %2 = tpu.matmul %0, %1, %cst {dimension_numbers = #tpu.dot_dimension_numbers<[1], [0], [0], [1], [0, 0, 1, 1], [], []>} : vector<128x128xbf16>, vector<128x128xbf16>, vector<128x128xf32> -> vector<128x128xf32>
    %c0_3 = arith.constant 0 : index
    %c0_4 = arith.constant 0 : index
    %3 = vector.load %arg3[%c0_3, %c0_4] : memref<1x128xf32, #tpu.memory_space<vmem>>, vector<1x128xf32>
    %4 = vector.broadcast %3 : vector<1x128xf32> to vector<128x128xf32>
    %5 = arith.addf %2, %4 : vector<128x128xf32>
    %cst_5 = arith.constant 0.000000e+00 : f32
    %6 = vector.broadcast %cst_5 : f32 to vector<128x128xf32>
    %7 = arith.maximumf %5, %6 : vector<128x128xf32>
    %8 = arith.truncf %7 : vector<128x128xf32> to vector<128x128xbf16>
    %c0_6 = arith.constant 0 : index
    %c0_7 = arith.constant 0 : index
    %9 = vector.load %arg4[%c0_6, %c0_7] : memref<128x128xbf16, #tpu.memory_space<vmem>>, vector<128x128xbf16>
    tpu.vector_store %arg4[%c0_6, %c0_7], %8 {strides = array<i32>} : memref<128x128xbf16, #tpu.memory_space<vmem>>, vector<128x128xbf16>,
    return
  }
  func.func @transform_0(%arg0: i32) -> (i32, i32) {
    %c0_i32 = arith.constant 0 : i32
    %c0_i32_0 = arith.constant 0 : i32
    return %arg0, %c0_i32 : i32, i32
  }
  func.func @transform_1(%arg0: i32) -> (i32, i32) {
    %c0_i32 = arith.constant 0 : i32
    %c0_i32_0 = arith.constant 0 : i32
    %c0_i32_1 = arith.constant 0 : i32
    return %c0_i32, %c0_i32_0 : i32, i32
  }
  func.func @transform_2(%arg0: i32) -> (i32, i32) {
    %c0_i32 = arith.constant 0 : i32
    %c0_i32_0 = arith.constant 0 : i32
    %c0_i32_1 = arith.constant 0 : i32
    return %c0_i32, %c0_i32_0 : i32, i32
  }
  func.func @transform_3(%arg0: i32) -> (i32, i32) {
    %c0_i32 = arith.constant 0 : i32
    %c0_i32_0 = arith.constant 0 : i32
    return %arg0, %c0_i32 : i32, i32
  }
}

</mosaic_0001>

<llo_original>
// kernel: tpu_custom_call.1
$region0: #{tpu_custom_call.1}
  #allocation0 [shape = 'u32[]', space=smem, size = 0x4, offset = 0x4, fixed_abs, tag = 'smem constant byte address 0x4 - core index']
  #allocation1 [shape = 'u32[144,128]{1,0:T(1,128)}', space=vmem, size = 0x12000, scoped, tag = 'internal scratch']
  %s0 = inlined_call_operand.hbm [shape: bf16[384,128], index: 0, kind: input, shape index: {}]
  %s1 = inlined_call_operand.hbm [shape: bf16[128,128], index: 1, kind: input, shape index: {}]
  %s2 = inlined_call_operand.vmem [shape: f32[1,128], index: 2, kind: input, shape index: {}]
  %s3 = inlined_call_operand.hbm [shape: bf16[384,128], index: 3, kind: output, shape index: {}]
  %s4 = sld [smem:[#allocation0]]
  $region53: #{tpu_custom_call.1} parent=0
    _
  %s6 = ssub.s32 1, %s4
  %s7 = scalar_select 0, %s6, %s4
  $region1: #{tpu_custom_call.1} parent=0
    #allocation2 [shape = 'u8[65536]{0}', space=vmem, size = 0x10000, scoped, tag = 'input window, operand 0']
    #allocation3 [shape = 's32[2]{0}', space=sflag, size = 0x8, scoped, tag = 'scoped memory for tpu_custom_call.1']
    #allocation4 [shape = 's32[2]{0}', space=sflag, size = 0x8, scoped, tag = 'scoped memory for tpu_custom_call.1']
    #allocation5 [shape = 'u8[32768]{0}', space=vmem, size = 0x8000, scoped, tag = 'input window, operand 1, single buffered']
    #allocation6 [shape = 's32[1]{0}', space=sflag, size = 0x4, scoped, tag = 'scoped memory for tpu_custom_call.1']
    #allocation7 [shape = 'u8[65536]{0}', space=vmem, size = 0x10000, scoped, tag = 'output window, operand 0']
    %8 = vsyncpa [#allocation3], 0
    %s9 = scalar_lea.sflag [#allocation3], 1
    %10 = vsyncpa %s9, 0
    %11 = vsyncpa [#allocation6], 0
    %12 = vsyncpa [#allocation4], 0
    %s13 = scalar_lea.sflag [#allocation4], 1
    %14 = vsyncpa %s13, 0
    loop: start=0, step=1, limit=5
    $region2: #{tpu_custom_call.1} parent=1 // loop_pre_header
      _
    $region3: #{tpu_custom_call.1} parent=1 // loop_header
      %s16 = sphi 0, %s20
      %p17 = scmp.ge.s32.totalorder %s16, 5
      %s26 = sphi 0, %s28
      %s29 = sphi 0, %s26
      %s30 = sphi 0, %s29
      %s46 = sphi 0, %s30
      %s50 = sphi 0, %s50
      %s52 = sphi 0, %s50
      %s53 = sphi 0, %s52
      %s67 = sphi 0, %s53
      %s71 = sphi 0, %s71
      %s73 = sphi 0, %s71
      %s74 = sphi 0, %s73
      %s88 = sphi 0, %s74
      %s94 = sphi 0, %s96
      %s97 = sphi 0, %s94
      %s98 = sphi 0, %s97
      %s114 = sphi 0, %s98
    $region4: #{tpu_custom_call.1} parent=1 // loop_header_branch
      %19 = sbr.rel (%p17) target = $region8
    $region5: #{tpu_custom_call.1} parent=1 // loop_body
      %s21 = ssub.s32 %s16, 1
      %s22 = ssub.s32 %s16, 2
      %s23 = sadd.s32 %s16, 1
      %s24 = ssub.s32 %s16, %s23
      %p25 = scmp.eq.s32.totalorder %s24, 0
      %s27 = sadd.s32 %s26, 1
      %s28 = scalar_select %p25, %s26, %s27
      %p31 = pneg %p25
      %p32 = scmp.eq.s32.totalorder %s16, 2
      %p33 = por %p31, %p32
      %p34 = scmp.ne.s32.totalorder %s26, %s29
      %p35 = scmp.eq.s32.totalorder %s16, 0
      %p36 = por %p34, %p35
      %p37 = scmp.ne.s32.totalorder %s26, %s29
      %p38 = scmp.eq.s32.totalorder %s21, 2
      %p39 = por %p37, %p38
      %p40 = scmp.ne.s32.totalorder %s29, %s30
      %p41 = scmp.eq.s32.totalorder %s21, 0
      %p42 = por %p40, %p41
      %p43 = scmp.ne.s32.totalorder %s29, %s30
      %p44 = scmp.eq.s32.totalorder %s22, 2
      %p45 = por %p43, %p44
      %p47 = scmp.ne.s32.totalorder %s30, %s46
      %p48 = scmp.eq.s32.totalorder %s22, 0
      %p49 = por %p47, %p48
      %s51 = sadd.s32 %s50, 1
      %p54 = scmp.eq.s32.totalorder %s16, 2
      %p55 = scmp.ne.s32.totalorder %s50, %s52
      %p56 = scmp.eq.s32.totalorder %s16, 0
      %p57 = por %p55, %p56
      %p58 = scmp.ne.s32.totalorder %s50, %s52
      %p59 = scmp.eq.s32.totalorder %s21, 2
      %p60 = por %p58, %p59
      %p61 = scmp.ne.s32.totalorder %s52, %s53
      %p62 = scmp.eq.s32.totalorder %s21, 0
      %p63 = por %p61, %p62
      %p64 = scmp.ne.s32.totalorder %s52, %s53
      %p65 = scmp.eq.s32.totalorder %s22, 2
      %p66 = por %p64, %p65
      %p68 = scmp.ne.s32.totalorder %s53, %s67
      %p69 = scmp.eq.s32.totalorder %s22, 0
      %p70 = por %p68, %p69
      %s72 = sadd.s32 %s71, 1
      %p75 = scmp.eq.s32.totalorder %s16, 2
      %p76 = scmp.ne.s32.totalorder %s71, %s73
      %p77 = scmp.eq.s32.totalorder %s16, 0
      %p78 = por %p76, %p77
      %p79 = scmp.ne.s32.totalorder %s71, %s73
      %p80 = scmp.eq.s32.totalorder %s21, 2
      %p81 = por %p79, %p80
      %p82 = scmp.ne.s32.totalorder %s73, %s74
      %p83 = scmp.eq.s32.totalorder %s21, 0
      %p84 = por %p82, %p83
      %p85 = scmp.ne.s32.totalorder %s73, %s74
      %p86 = scmp.eq.s32.totalorder %s22, 2
      %p87 = por %p85, %p86
      %p89 = scmp.ne.s32.totalorder %s74, %s88
      %p90 = scmp.eq.s32.totalorder %s22, 0
      %p91 = por %p89, %p90
      %s92 = ssub.s32 %s16, %s23
      %p93 = scmp.eq.s32.totalorder %s92, 0
      %s95 = sadd.s32 %s94, 1
      %s96 = scalar_select %p93, %s94, %s95
      %p99 = pneg %p93
      %p100 = scmp.eq.s32.totalorder %s16, 2
      %p101 = por %p99, %p100
      %p102 = scmp.ne.s32.totalorder %s94, %s97
      %p103 = scmp.eq.s32.totalorder %s16, 0
      %p104 = por %p102, %p103
      %p105 = scmp.ne.s32.totalorder %s94, %s97
      %p106 = scmp.eq.s32.totalorder %s21, 2
      %p107 = por %p105, %p106
      %p108 = scmp.ne.s32.totalorder %s97, %s98
      %p109 = scmp.eq.s32.totalorder %s21, 0
      %p110 = por %p108, %p109
      %p111 = scmp.ne.s32.totalorder %s97, %s98
      %p112 = scmp.eq.s32.totalorder %s22, 2
      %p113 = por %p111, %p112
      %p115 = scmp.ne.s32.totalorder %s98, %s114
      %p116 = scmp.eq.s32.totalorder %s22, 0
      %p117 = por %p115, %p116
      %p118 = scmp.le.s32.totalorder 1, %s16
      %p119 = scmp.lt.s32.totalorder %s16, 4
      %p120 = pnand %p118, %p119
      %p121 = pneg %p120
      // Predicated region
      $region9: #{tpu_custom_call.1} parent=5 // pred_check
        _
      $region10: #{tpu_custom_call.1} parent=5 // pred_check_branch
        %123 = sbr.rel (%p120) target = $region12
      $region11: #{tpu_custom_call.1} parent=5 // pred_region
        %s124 = ssub.s32 %s16, 1
        // Predicated region
        $region13: #{tpu_custom_call.1} parent=11 // pred_check
          %p125 = pneg %p63
        $region14: #{tpu_custom_call.1} parent=11 // pred_check_branch
          %127 = sbr.rel (%p125) target = $region16
        $region15: #{tpu_custom_call.1} parent=11 // pred_region
          %s129 = ssub.s32 1024, 1024
          %130 = vsyncadd [#allocation6], %s129
          %s131 = sshll.u32 [#allocation5], 4
          %s132 = int_to_ptr.vmem [resolvable:$true] %s131
          %137 = dma.hbm_to_vmem [thread:$0]  %s1, 1024, %s132, [#allocation6], 64, 64, 4
        $region16: #{tpu_custom_call.1} parent=11 // pred_fallthru
          _
        // Predicated region
        $region17: #{tpu_custom_call.1} parent=11 // pred_check
          %p138 = pneg %p84
        $region18: #{tpu_custom_call.1} parent=11 // pred_check_branch
          %140 = sbr.rel (%p138) target = $region20
        $region19: #{tpu_custom_call.1} parent=11 // pred_region
          _
        $region20: #{tpu_custom_call.1} parent=11 // pred_fallthru
          _
      $region12: #{tpu_custom_call.1} parent=5 // pred_fallthru
        _
      %p141 = scmp.lt.s32.totalorder %s16, 3
      // Predicated region
      $region21: #{tpu_custom_call.1} parent=5 // pred_check
        %p142 = pneg %p141
      $region22: #{tpu_custom_call.1} parent=5 // pred_check_branch
        %144 = sbr.rel (%p142) target = $region24
      $region23: #{tpu_custom_call.1} parent=5 // pred_region
        // Predicated region
        $region25: #{tpu_custom_call.1} parent=23 // pred_check
          %p145 = pneg %p36
        $region26: #{tpu_custom_call.1} parent=23 // pred_check_branch
          %147 = sbr.rel (%p145) target = $region28
        $region27: #{tpu_custom_call.1} parent=23 // pred_region
          %s148 = sand.u32 %s26, 1
          %s149 = scalar_lea.sflag [#allocation3], %s148
          %s150 = sand.u32 %s26, 1
          %s151 = smul.addr %s150, 64
          %s152 = scalar_lea.vmem [#allocation2], %s151
          %s153 = smul.u32 16, %s16
          %s155 = ssub.s32 1024, 1024
          %156 = vsyncadd %s149, %s155
          %s157 = smul.addr %s153, 64
          %s158 = scalar_lea.hbm %s0, %s157
          %s159 = sshll.u32 %s152, 4
          %s160 = int_to_ptr.vmem [resolvable:$true] %s159
          %165 = dma.hbm_to_vmem [thread:$0]  %s158, 1024, %s160, %s149, 64, 64, 4
        $region28: #{tpu_custom_call.1} parent=23 // pred_fallthru
          _
      $region24: #{tpu_custom_call.1} parent=5 // pred_fallthru
        _
      %p166 = scmp.le.s32.totalorder 1, %s16
      %p167 = scmp.lt.s32.totalorder %s16, 4
      %p168 = pnand %p166, %p167
      %p169 = pneg %p168
      // Predicated region
      $region29: #{tpu_custom_call.1} parent=5 // pred_check
        _
      $region30: #{tpu_custom_call.1} parent=5 // pred_check_branch
        %171 = sbr.rel (%p168) target = $region32
      $region31: #{tpu_custom_call.1} parent=5 // pred_region
        %s172 = ssub.s32 %s16, 1
        %s173 = sand.u32 %s29, 1
        %s174 = scalar_lea.sflag [#allocation3], %s173
        %s175 = sand.u32 %s29, 1
        %s176 = smul.addr %s175, 64
        %s177 = scalar_lea.vmem [#allocation2], %s176
        // Predicated region
        $region33: #{tpu_custom_call.1} parent=31 // pred_check
          %p178 = pneg %p42
        $region34: #{tpu_custom_call.1} parent=31 // pred_check_branch
          %180 = sbr.rel (%p178) target = $region36
        $region35: #{tpu_custom_call.1} parent=31 // pred_region
          %181 = dma.done %s174, 1024
        $region36: #{tpu_custom_call.1} parent=31 // pred_fallthru
          _
        // Predicated region
        $region37: #{tpu_custom_call.1} parent=31 // pred_check
          %p182 = pneg %p63
        $region38: #{tpu_custom_call.1} parent=31 // pred_check_branch
          %184 = sbr.rel (%p182) target = $region40
        $region39: #{tpu_custom_call.1} parent=31 // pred_region
          %185 = dma.done [#allocation6], 1024
        $region40: #{tpu_custom_call.1} parent=31 // pred_fallthru
          _
        %s186 = sand.u32 %s29, 1
        %s187 = scalar_lea.sflag [#allocation3], %s186
        %s188 = sand.u32 %s29, 1
        %s189 = smul.addr %s188, 64
        %s190 = scalar_lea.vmem [#allocation2], %s189
        %p191 = pneg %p42
        %p192 = pneg %p39
        %p193 = pneg %p63
        %p194 = pneg %p60
        %p195 = pneg %p84
        %p196 = pneg %p81
        %p197 = pneg %p110
        %p198 = pneg %p107
        %s199 = sand.u32 %s97, 1
        %s200 = scalar_lea.sflag [#allocation4], %s199
        %s201 = sand.u32 %s97, 1
        %s202 = smul.addr %s201, 64
        %s203 = scalar_lea.vmem [#allocation7], %s202
        %s204 = smul.u32 16, %s21
        %s205 = smul.u32 16, %s21
        %v207 = vld [vmem:[%s177] sm:$0xf]
        %v208 = vld [vmem:[%s177 + $0x4] sm:$0xf]
        %v209 = vld [vmem:[%s177 + $0x8] sm:$0xf]
        %v210 = vld [vmem:[%s177 + $0xc] sm:$0xf]
        %v211 = vld [vmem:[%s177 + $0x10] sm:$0xf]
        %v212 = vld [vmem:[%s177 + $0x14] sm:$0xf]
        %v213 = vld [vmem:[%s177 + $0x18] sm:$0xf]
        %v214 = vld [vmem:[%s177 + $0x1c] sm:$0xf]
        %v215 = vld [vmem:[%s177 + $0x20] sm:$0xf]
        %v216 = vld [vmem:[%s177 + $0x24] sm:$0xf]
        %v217 = vld [vmem:[%s177 + $0x28] sm:$0xf]
        %v218 = vld [vmem:[%s177 + $0x2c] sm:$0xf]
        %v219 = vld [vmem:[%s177 + $0x30] sm:$0xf]
        %v220 = vld [vmem:[%s177 + $0x34] sm:$0xf]
        %v221 = vld [vmem:[%s177 + $0x38] sm:$0xf]
        %v222 = vld [vmem:[%s177 + $0x3c] sm:$0xf]
        %v223 = vld [vmem:[#allocation5] sm:$0xf]
        %v224 = vld [vmem:[#allocation5 + $0x4] sm:$0xf]
        %v225 = vld [vmem:[#allocation5 + $0x8] sm:$0xf]
        %v226 = vld [vmem:[#allocation5 + $0xc] sm:$0xf]
        %v227 = vld [vmem:[#allocation5 + $0x10] sm:$0xf]
        %v228 = vld [vmem:[#allocation5 + $0x14] sm:$0xf]
        %v229 = vld [vmem:[#allocation5 + $0x18] sm:$0xf]
        %v230 = vld [vmem:[#allocation5 + $0x1c] sm:$0xf]
        %v231 = vld [vmem:[#allocation5 + $0x20] sm:$0xf]
        %v232 = vld [vmem:[#allocation5 + $0x24] sm:$0xf]
        %v233 = vld [vmem:[#allocation5 + $0x28] sm:$0xf]
        %v234 = vld [vmem:[#allocation5 + $0x2c] sm:$0xf]
        %v235 = vld [vmem:[#allocation5 + $0x30] sm:$0xf]
        %v236 = vld [vmem:[#allocation5 + $0x34] sm:$0xf]
        %v237 = vld [vmem:[#allocation5 + $0x38] sm:$0xf]
        %v238 = vld [vmem:[#allocation5 + $0x3c] sm:$0xf]
        %v239 = vld [vmem:[%s2] sm:$0x1]
        %v241 = vlaneseq
        %v242 = vshrl.u32 %v241, 7
        %v243 = vsub.s32 0, %v242
        %v244 = vrot.slane %v239, %v243
        %v262 = vunpack.c.l.b16 %v207
        %v263 = vunpack.c.l.b16 %v208
        %v264 = vunpack.c.l.b16 %v209
        %v265 = vunpack.c.l.b16 %v210
        %v266 = vunpack.c.l.b16 %v211
        %v267 = vunpack.c.l.b16 %v212
        %v268 = vunpack.c.l.b16 %v213
        %v269 = vunpack.c.l.b16 %v214
        %v270 = vunpack.c.l.b16 %v215
        %v271 = vunpack.c.l.b16 %v216
        %v272 = vunpack.c.l.b16 %v217
        %v273 = vunpack.c.l.b16 %v218
        %v274 = vunpack.c.l.b16 %v219
        %v275 = vunpack.c.l.b16 %v220
        %v276 = vunpack.c.l.b16 %v221
        %v277 = vunpack.c.l.b16 %v222
        %v278 = vpack.c.b16 %v263, %v262
        %v279 = vpack.c.b16 %v265, %v264
        %v280 = vpack.c.b16 %v267, %v266
        %v281 = vpack.c.b16 %v269, %v268
        %v282 = vpack.c.b16 %v271, %v270
        %v283 = vpack.c.b16 %v273, %v272
        %v284 = vpack.c.b16 %v275, %v274
        %v285 = vpack.c.b16 %v277, %v276
        %v310 = vunpack.c.l.b16 %v223
        %v311 = vunpack.c.l.b16 %v224
        %v312 = vunpack.c.l.b16 %v225
        %v313 = vunpack.c.l.b16 %v226
        %v314 = vunpack.c.l.b16 %v227
        %v315 = vunpack.c.l.b16 %v228
        %v316 = vunpack.c.l.b16 %v229
        %v317 = vunpack.c.l.b16 %v230
        %v318 = vunpack.c.l.b16 %v231
        %v319 = vunpack.c.l.b16 %v232
        %v320 = vunpack.c.l.b16 %v233
        %v321 = vunpack.c.l.b16 %v234
        %v322 = vunpack.c.l.b16 %v235
        %v323 = vunpack.c.l.b16 %v236
        %v324 = vunpack.c.l.b16 %v237
        %v325 = vunpack.c.l.b16 %v238
        %v326 = vpack.c.b16 %v311, %v310
        %v327 = vpack.c.b16 %v313, %v312
        %v328 = vpack.c.b16 %v315, %v314
        %v329 = vpack.c.b16 %v317, %v316
        %v330 = vpack.c.b16 %v319, %v318
        %v331 = vpack.c.b16 %v321, %v320
        %v332 = vpack.c.b16 %v323, %v322
        %v333 = vpack.c.b16 %v325, %v324
        %342 = vmatprep.subr.bf16.mxu0 0
        %343 = vmatpush1.bf16.msra.mxu0 %v326
        %344 = vmatprep.subr.bf16.mxu0 0
        %345 = vmatpush1.bf16.msra.mxu0 %v327
        %346 = vmatprep.subr.bf16.mxu0 0
        %347 = vmatpush1.bf16.msra.mxu0 %v328
        %348 = vmatprep.subr.bf16.mxu0 0
        %349 = vmatpush1.bf16.msra.mxu0 %v329
        %350 = vmatprep.subr.bf16.mxu0 0
        %351 = vmatpush1.bf16.msra.mxu0 %v330
        %352 = vmatprep.subr.bf16.mxu0 0
        %353 = vmatpush1.bf16.msra.mxu0 %v331
        %354 = vmatprep.subr.bf16.mxu0 0
        %355 = vmatpush1.bf16.msra.mxu0 %v332
        %356 = vmatprep.subr.bf16.mxu0 0
        %357 = vmatpush1.bf16.msra.mxu0 %v333
        %358 = vmatprep.subr.bf16.mxu0 0
        %359 = vmatpush1.bf16.msra.mxu0 0
        %360 = vmatprep.subr.bf16.mxu0 0
        %361 = vmatpush1.bf16.msra.mxu0 0
        %362 = vmatprep.subr.bf16.mxu0 0
        %363 = vmatpush1.bf16.msra.mxu0 0
        %364 = vmatprep.subr.bf16.mxu0 0
        %365 = vmatpush1.bf16.msra.mxu0 0
        %366 = vmatprep.subr.bf16.mxu0 0
        %367 = vmatpush1.bf16.msra.mxu0 0
        %368 = vmatprep.subr.bf16.mxu0 0
        %369 = vmatpush1.bf16.msra.mxu0 0
        %370 = vmatprep.subr.bf16.mxu0 0
        %371 = vmatpush1.bf16.msra.mxu0 0
        %372 = vmatprep.subr.bf16.mxu0 0
        %373 = vmatpush1.bf16.msra.mxu0 0
        %374 = vmatprep.mubr.bf16.mxu0 0
        %375 = vmatmul.mubr.bf16.gmra.mrb[0].mxu0 %v278
        %v376 = vpop.f32.mrb[0].mxu0
        %v377 = vadd.f32 %v244, %v376
        %v378 = vpop.f32.mrb[0].mxu0
        %v379 = vpop.f32.mrb[0].mxu0
        %v380 = vadd.f32 %v244, %v379
        %v381 = vpop.f32.mrb[0].mxu0
        %382 = vmatprep.mubr.bf16.mxu0 0
        %383 = vmatmul.mubr.bf16.gmra.mrb[0].mxu0 %v279
        %v384 = vpop.f32.mrb[0].mxu0
        %v385 = vadd.f32 %v244, %v384
        %v386 = vpop.f32.mrb[0].mxu0
        %v387 = vpop.f32.mrb[0].mxu0
        %v388 = vadd.f32 %v244, %v387
        %v389 = vpop.f32.mrb[0].mxu0
        %390 = vmatprep.mubr.bf16.mxu0 0
        %391 = vmatmul.mubr.bf16.gmra.mrb[0].mxu0 %v280
        %v392 = vpop.f32.mrb[0].mxu0
        %v393 = vadd.f32 %v244, %v392
        %v394 = vpop.f32.mrb[0].mxu0
        %v395 = vpop.f32.mrb[0].mxu0
        %v396 = vadd.f32 %v244, %v395
        %v397 = vpop.f32.mrb[0].mxu0
        %398 = vmatprep.mubr.bf16.mxu0 0
        %399 = vmatmul.mubr.bf16.gmra.mrb[0].mxu0 %v281
        %v400 = vpop.f32.mrb[0].mxu0
        %v401 = vadd.f32 %v244, %v400
        %v402 = vpop.f32.mrb[0].mxu0
        %v403 = vpop.f32.mrb[0].mxu0
        %v404 = vadd.f32 %v244, %v403
        %v405 = vpop.f32.mrb[0].mxu0
        %406 = vmatprep.mubr.bf16.mxu0 0
        %407 = vmatmul.mubr.bf16.gmra.mrb[0].mxu0 %v282
        %v408 = vpop.f32.mrb[0].mxu0
        %v409 = vadd.f32 %v244, %v408
        %v410 = vpop.f32.mrb[0].mxu0
        %v411 = vpop.f32.mrb[0].mxu0
        %v412 = vadd.f32 %v244, %v411
        %v413 = vpop.f32.mrb[0].mxu0
        %414 = vmatprep.mubr.bf16.mxu0 0
        %415 = vmatmul.mubr.bf16.gmra.mrb[0].mxu0 %v283
        %v416 = vpop.f32.mrb[0].mxu0
        %v417 = vadd.f32 %v244, %v416
        %v418 = vpop.f32.mrb[0].mxu0
        %v419 = vpop.f32.mrb[0].mxu0
        %v420 = vadd.f32 %v244, %v419
        %v421 = vpop.f32.mrb[0].mxu0
        %422 = vmatprep.mubr.bf16.mxu0 0
        %423 = vmatmul.mubr.bf16.gmra.mrb[0].mxu0 %v284
        %v424 = vpop.f32.mrb[0].mxu0
        %v425 = vadd.f32 %v244, %v424
        %v426 = vpop.f32.mrb[0].mxu0
        %v427 = vpop.f32.mrb[0].mxu0
        %v428 = vadd.f32 %v244, %v427
        %v429 = vpop.f32.mrb[0].mxu0
        %430 = vmatprep.mubr.bf16.mxu0 0
        %431 = vmatmul.mubr.bf16.gmra.mrb[0].mxu0 %v285
        %v432 = vpop.f32.mrb[0].mxu0
        %v433 = vadd.f32 %v244, %v432
        %v434 = vpop.f32.mrb[0].mxu0
        %v435 = vpop.f32.mrb[0].mxu0
        %v436 = vadd.f32 %v244, %v435
        %v437 = vpop.f32.mrb[0].mxu0
        %438 = vdwg.mxu0
        %v439 = vmax.f32 %v377, 0.0
        %v440 = vmax.f32 %v380, 0.0
        %v441 = vmax.f32 %v385, 0.0
        %v442 = vmax.f32 %v388, 0.0
        %v443 = vmax.f32 %v393, 0.0
        %v444 = vmax.f32 %v396, 0.0
        %v445 = vmax.f32 %v401, 0.0
        %v446 = vmax.f32 %v404, 0.0
        %v447 = vmax.f32 %v409, 0.0
        %v448 = vmax.f32 %v412, 0.0
        %v449 = vmax.f32 %v417, 0.0
        %v450 = vmax.f32 %v420, 0.0
        %v451 = vmax.f32 %v425, 0.0
        %v452 = vmax.f32 %v428, 0.0
        %v453 = vmax.f32 %v433, 0.0
        %v454 = vmax.f32 %v436, 0.0
        %v455 = vpack.c.bf16 %v440, %v439
        %v456 = vpack.c.bf16 %v442, %v441
        %v457 = vpack.c.bf16 %v444, %v443
        %v458 = vpack.c.bf16 %v446, %v445
        %v459 = vpack.c.bf16 %v448, %v447
        %v460 = vpack.c.bf16 %v450, %v449
        %v461 = vpack.c.bf16 %v452, %v451
        %v462 = vpack.c.bf16 %v454, %v453
        %v471 = vunpack.c.l.b16 %v455
        %v472 = vunpack.c.h.b16 %v455
        %v473 = vunpack.c.l.b16 %v456
        %v474 = vunpack.c.h.b16 %v456
        %v475 = vunpack.c.l.b16 %v457
        %v476 = vunpack.c.h.b16 %v457
        %v477 = vunpack.c.l.b16 %v458
        %v478 = vunpack.c.h.b16 %v458
        %v479 = vunpack.c.l.b16 %v459
        %v480 = vunpack.c.h.b16 %v459
        %v481 = vunpack.c.l.b16 %v460
        %v482 = vunpack.c.h.b16 %v460
        %v483 = vunpack.c.l.b16 %v461
        %v484 = vunpack.c.h.b16 %v461
        %v485 = vunpack.c.l.b16 %v462
        %v486 = vunpack.c.h.b16 %v462
        %v487 = vpack.c.b16 %v471, %v471
        %v488 = vpack.c.b16 %v472, %v472
        %v489 = vpack.c.b16 %v473, %v473
        %v490 = vpack.c.b16 %v474, %v474
        %v491 = vpack.c.b16 %v475, %v475
        %v492 = vpack.c.b16 %v476, %v476
        %v493 = vpack.c.b16 %v477, %v477
        %v494 = vpack.c.b16 %v478, %v478
        %v495 = vpack.c.b16 %v479, %v479
        %v496 = vpack.c.b16 %v480, %v480
        %v497 = vpack.c.b16 %v481, %v481
        %v498 = vpack.c.b16 %v482, %v482
        %v499 = vpack.c.b16 %v483, %v483
        %v500 = vpack.c.b16 %v484, %v484
        %v501 = vpack.c.b16 %v485, %v485
        %v502 = vpack.c.b16 %v486, %v486
        %519 = vst [vmem:[%s203] sm:$0xf] %v487
        %520 = vst [vmem:[%s203 + $0x4] sm:$0xf] %v488
        %521 = vst [vmem:[%s203 + $0x8] sm:$0xf] %v489
        %522 = vst [vmem:[%s203 + $0xc] sm:$0xf] %v490
        %523 = vst [vmem:[%s203 + $0x10] sm:$0xf] %v491
        %524 = vst [vmem:[%s203 + $0x14] sm:$0xf] %v492
        %525 = vst [vmem:[%s203 + $0x18] sm:$0xf] %v493
        %526 = vst [vmem:[%s203 + $0x1c] sm:$0xf] %v494
        %527 = vst [vmem:[%s203 + $0x20] sm:$0xf] %v495
        %528 = vst [vmem:[%s203 + $0x24] sm:$0xf] %v496
        %529 = vst [vmem:[%s203 + $0x28] sm:$0xf] %v497
        %530 = vst [vmem:[%s203 + $0x2c] sm:$0xf] %v498
        %531 = vst [vmem:[%s203 + $0x30] sm:$0xf] %v499
        %532 = vst [vmem:[%s203 + $0x34] sm:$0xf] %v500
        %533 = vst [vmem:[%s203 + $0x38] sm:$0xf] %v501
        %534 = vst [vmem:[%s203 + $0x3c] sm:$0xf] %v502
        %s535 = sand.u32 %s97, 1
        %s536 = scalar_lea.sflag [#allocation4], %s535
        %s537 = sand.u32 %s97, 1
        %s538 = smul.addr %s537, 64
        %s539 = scalar_lea.vmem [#allocation7], %s538
        // Predicated region
        $region41: #{tpu_custom_call.1} parent=31 // pred_check
          %p540 = pneg %p107
        $region42: #{tpu_custom_call.1} parent=31 // pred_check_branch
          %542 = sbr.rel (%p540) target = $region44
        $region43: #{tpu_custom_call.1} parent=31 // pred_region
          %s543 = smul.u32 16, %s21
          %s545 = ssub.s32 1024, 1024
          %546 = vsyncadd %s536, %s545
          %s547 = smul.addr %s543, 64
          %s548 = scalar_lea.hbm %s3, %s547
          %s549 = sshll.u32 %s539, 4
          %s550 = int_to_ptr.vmem [resolvable:$true] %s549
          %555 = dma.vmem_to_hbm [thread:$0]  %s550, 1024, %s548, %s536, 64, 64, 4
        $region44: #{tpu_custom_call.1} parent=31 // pred_fallthru
          _
      $region32: #{tpu_custom_call.1} parent=5 // pred_fallthru
        _
      %p556 = scmp.le.s32.totalorder 2, %s16
      // Predicated region
      $region45: #{tpu_custom_call.1} parent=5 // pred_check
        %p557 = pneg %p556
      $region46: #{tpu_custom_call.1} parent=5 // pred_check_branch
        %559 = sbr.rel (%p557) target = $region48
      $region47: #{tpu_custom_call.1} parent=5 // pred_region
        %s560 = ssub.s32 %s16, 2
        // Predicated region
        $region49: #{tpu_custom_call.1} parent=47 // pred_check
          %p561 = pneg %p113
        $region50: #{tpu_custom_call.1} parent=47 // pred_check_branch
          %563 = sbr.rel (%p561) target = $region52
        $region51: #{tpu_custom_call.1} parent=47 // pred_region
          %s564 = sand.u32 %s98, 1
          %s565 = scalar_lea.sflag [#allocation4], %s564
          %s566 = sand.u32 %s98, 1
          %s567 = smul.addr %s566, 64
          %s568 = scalar_lea.vmem [#allocation7], %s567
          %569 = dma.done %s565, 1024
        $region52: #{tpu_custom_call.1} parent=47 // pred_fallthru
          _
      $region48: #{tpu_custom_call.1} parent=5 // pred_fallthru
        _
    $region6: #{tpu_custom_call.1} parent=1 // loop_footer
      %s20 = sadd.s32 1, %s16
    $region7: #{tpu_custom_call.1} parent=1 // loop_footer_branch
      %15 = sbr.rel target = $region3
    $region8: #{tpu_custom_call.1} parent=1 // loop_exit
      _
    %570 = vsyncpa [#allocation3], 1
    %s571 = scalar_lea.sflag [#allocation3], 1
    %572 = vsyncpa %s571, 1
    %573 = vsyncpa [#allocation6], 1
    %574 = vsyncpa [#allocation4], 1
    %s575 = scalar_lea.sflag [#allocation4], 1
    %576 = vsyncpa %s575, 1

</llo_original>
